<compile_context>
chip_gen: v6e
topology: v6e:2x2x1
jax: 0.10.0
libtpu: 0.0.40
codegen_flags: <defaults>
</compile_context>

<pallas_src>
import functools

import jax
import jax.numpy as jnp
from jax import lax
from jax.experimental import pallas as pl
from jax.experimental.pallas import tpu as pltpu


def _embed_kernel(seed_ref, x_ref, pe_ref, o_ref, *,
                  dropout_p, training, tile_rows, tile_cols, lane_tiled):
    # x_ref / o_ref: (TB, TL) slab tile; pe_ref: (1, TL) broadcast over rows.
    y = x_ref[...] + pe_ref[...]          # native dtype, single VPU add

    if training and dropout_p > 0.0:
        shape = y.shape
        if lane_tiled:
            col_off = pl.program_id(0) * tile_cols
            row_off = pl.program_id(1) * tile_rows
        else:
            col_off = 0
            row_off = pl.program_id(0) * tile_rows

        # Counter-based PRNG: unique bits per (global row, global col, seed),
        # independent of tiling / execution order.  Pure uint32 VPU ops.
        r = (lax.broadcasted_iota(jnp.int32, shape, 0) + row_off).astype(jnp.uint32)
        c = (lax.broadcasted_iota(jnp.int32, shape, 1) + col_off).astype(jnp.uint32)
        seed = seed_ref[0].astype(jnp.uint32)
        h = seed ^ (r * jnp.uint32(0x9E3779B1)) ^ (c * jnp.uint32(0x85EBCA77))
        h = h ^ (h >> 16)
        h = h * jnp.uint32(0x7FEB352D)
        h = h ^ (h >> 15)
        h = h * jnp.uint32(0x846CA68B)
        h = h ^ (h >> 16)

        # Integer threshold: P(h >= p * 2^32) = 1 - p  (no float construction).
        thresh = jnp.uint32(min(int(round(dropout_p * 2.0**32)), 2**32 - 1))
        keep = h >= thresh
        scale = jnp.asarray(1.0 / (1.0 - dropout_p), dtype=y.dtype)
        y = jnp.where(keep, y * scale, jnp.zeros_like(y))

    o_ref[...] = y


def _pick_tiles(B, L, itemsize, target_bytes=4 * 1024 * 1024):
    """Pick (TB, TL) block sizes for the (B, L) slab.

    Each block dim is either a multiple of the native tile (sublane multiple
    is dtype-aware: 8 f32 / 16 bf16 / 32 int8; 128 lanes) or the full array
    dim.  The sublane clamp is part of the byte budget so blocks never exceed
    ~target_bytes.
    """
    sub = max(8, 32 // itemsize)                     # native sublane packing

    # Whole slab fits in one block.
    if B * L * itemsize <= target_bytes:
        return B, L

    # Full lane extent with a sublane-tiled batch dim, if the budget allows.
    rows_fit = target_bytes // (L * itemsize)
    if rows_fit >= sub:
        TB = min(B, (rows_fit // sub) * sub)         # == B (full) or multiple of sub
        return TB, L

    # Lane dim must be tiled: smallest legal TB, lane tile a multiple of 128.
    TB = B if B <= sub else sub
    TL = (target_bytes // (TB * itemsize)) // 128 * 128
    TL = max(128, min(TL, L))
    return TB, TL


def bert_embedding2_forward(sequence, pe, *, dropout_p=0.1, training=False, seed=0):
    """sequence: (B, S, D); pe: (1, max_len, D); returns (B, S, D)."""
    B, S, D = sequence.shape
    assert pe.shape[0] == 1 and pe.shape[2] == D and pe.shape[1] >= S

    L = S * D
    itemsize = sequence.dtype.itemsize

    # Lane-dense 2-D views: (B, S, D) -> (B, S*D); pe[:, :S, :] -> (1, S*D).
    x2 = sequence.reshape(B, L)
    pe2 = pe[:, :S, :].reshape(1, L)

    TB, TL = _pick_tiles(B, L, itemsize)
    nb, nl = pl.cdiv(B, TB), pl.cdiv(L, TL)
    lane_tiled = nl > 1

    kernel = functools.partial(
        _embed_kernel,
        dropout_p=float(dropout_p), training=bool(training),
        tile_rows=TB, tile_cols=TL, lane_tiled=lane_tiled)
    seed_arr = jnp.asarray([seed], dtype=jnp.int32)

    if lane_tiled:
        # pe block depends only on the outer lane axis -> resident across the
        # inner batch sweep; outer axis has many tiles for megacore split.
        grid = (nl, nb)
        in_specs = [
            pl.BlockSpec((TB, TL), lambda l, b, s: (b, l)),   # sequence slab
            pl.BlockSpec((1, TL), lambda l, b, s: (0, l)),    # pe (batch-invariant)
        ]
        out_specs = pl.BlockSpec((TB, TL), lambda l, b, s: (b, l))
        dims = ("parallel", "parallel")
    else:
        # Full lane extent in one block: 1-D grid over batch tiles, pe block
        # index is constant (fetched once, stays resident in VMEM).
        grid = (nb,)
        in_specs = [
            pl.BlockSpec((TB, L), lambda b, s: (b, 0)),
            pl.BlockSpec((1, L), lambda b, s: (0, 0)),
        ]
        out_specs = pl.BlockSpec((TB, L), lambda b, s: (b, 0))
        dims = ("parallel",)

    cost = pl.CostEstimate(
        flops=B * L,                                   # one add per element
        transcendentals=0,
        bytes_accessed=(2 * B * L + L) * itemsize,     # read x, write out, read pe
    )

    out2 = pl.pallas_call(
        kernel,
        out_shape=jax.ShapeDtypeStruct((B, L), sequence.dtype),
        grid_spec=pltpu.PrefetchScalarGridSpec(
            num_scalar_prefetch=1,          # dropout seed lives in SMEM
            grid=grid,
            in_specs=in_specs,
            out_specs=out_specs,
        ),
        compiler_params=pltpu.CompilerParams(
            dimension_semantics=dims,
            # ~4 MiB blocks -> ~17 MiB double-buffered working set; 48 MiB
            # scoped limit leaves headroom on every generation (v7x: 64 MiB).
            vmem_limit_bytes=48 * 1024 * 1024,
        ),
        cost_estimate=cost,
    )(seed_arr, x2, pe2)

    return out2.reshape(B, S, D)


if __name__ == "__main__":
    # Small shapes consistent with the module: d_model=32, max_len=16, B=2, S=8.
    B, S, D, MAX_LEN = 2, 8, 32, 16

    key = jax.random.PRNGKey(0)
    k_seq, k_pe = jax.random.split(key)

    # Parameter init matches torch.nn.init.normal_(std=0.02).
    pe = 0.02 * jax.random.normal(k_pe, (1, MAX_LEN, D), dtype=jnp.float32)
    sequence = jax.random.normal(k_seq, (B, S, D), dtype=jnp.float32)

    ref = sequence + pe[:, :S, :]

    # Eval mode (dropout = identity): exact match against the reference.
    out = jax.block_until_ready(bert_embedding2_forward(sequence, pe, training=False))
    assert out.shape == (B, S, D)
    assert jnp.allclose(out, ref, atol=1e-6), "eval-mode mismatch vs reference"

    # Training mode (fused dropout, p=0.1): every element must be either 0
    # (dropped) or ref / (1 - p) (kept & rescaled).
    p = 0.1
    out_tr = jax.block_until_ready(
        bert_embedding2_forward(sequence, pe, dropout_p=p, training=True, seed=1234))
    scaled = ref / (1.0 - p)
    ok = jnp.isclose(out_tr, 0.0, atol=1e-6) | jnp.isclose(out_tr, scaled, rtol=1e-5, atol=1e-6)
    assert bool(jnp.all(ok)), "training-mode dropout produced unexpected values"

    print("KERNEL_OK")
</pallas_src>

<mosaic_0001>
module attributes {stable_mosaic.version = 11 : i64} {
  func.func @_embed_kernel(%arg0: i32, %arg1: memref<1xi32, #tpu.memory_space<smem>>, %arg2: memref<2x256xf32, #tpu.memory_space<vmem>>, %arg3: memref<1x256xf32, #tpu.memory_space<vmem>>, %arg4: memref<2x256xf32, #tpu.memory_space<vmem>>) attributes {dimension_semantics = [#tpu.dimension_semantics<parallel>], iteration_bounds = array<i64: 1>, scalar_prefetch = 1 : i64, scratch_operands = 0 : i64, tpu.core_type = #tpu.core_type<tc>, window_params = [{transform_indices = @transform_0, window_bounds = array<i64: 2, 256>}, {pipeline_mode = #tpu.pipeline_mode<synchronous>, transform_indices = @transform_1, window_bounds = array<i64: 1, 256>}, {transform_indices = @transform_2, window_bounds = array<i64: 2, 256>}]} {
    %c0 = arith.constant 0 : index
    %c0_0 = arith.constant 0 : index
    %0 = vector.load %arg2[%c0, %c0_0] : memref<2x256xf32, #tpu.memory_space<vmem>>, vector<2x256xf32>
    %c0_1 = arith.constant 0 : index
    %c0_2 = arith.constant 0 : index
    %1 = vector.load %arg3[%c0_1, %c0_2] : memref<1x256xf32, #tpu.memory_space<vmem>>, vector<1x256xf32>
    %2 = vector.broadcast %1 : vector<1x256xf32> to vector<2x256xf32>
    %3 = arith.addf %0, %2 : vector<2x256xf32>
    %c0_3 = arith.constant 0 : index
    %c0_4 = arith.constant 0 : index
    %4 = vector.load %arg4[%c0_3, %c0_4] : memref<2x256xf32, #tpu.memory_space<vmem>>, vector<2x256xf32>
    tpu.vector_store %arg4[%c0_3, %c0_4], %3 {strides = array<i32>} : memref<2x256xf32, #tpu.memory_space<vmem>>, vector<2x256xf32>,
    return
  }
  func.func @transform_0(%arg0: i32, %arg1: memref<1xi32, #tpu.memory_space<smem>>) -> (i32, i32) {
    %c0_i32 = arith.constant 0 : i32
    %c0_i32_0 = arith.constant 0 : i32
    return %arg0, %c0_i32 : i32, i32
  }
  func.func @transform_1(%arg0: i32, %arg1: memref<1xi32, #tpu.memory_space<smem>>) -> (i32, i32) {
    %c0_i32 = arith.constant 0 : i32
    %c0_i32_0 = arith.constant 0 : i32
    %c0_i32_1 = arith.constant 0 : i32
    return %c0_i32, %c0_i32_0 : i32, i32
  }
  func.func @transform_2(%arg0: i32, %arg1: memref<1xi32, #tpu.memory_space<smem>>) -> (i32, i32) {
    %c0_i32 = arith.constant 0 : i32
    %c0_i32_0 = arith.constant 0 : i32
    return %arg0, %c0_i32 : i32, i32
  }
}

</mosaic_0001>

<llo_original>
// kernel: tpu_custom_call.1
$region0: #{tpu_custom_call.1}
  #allocation0 [shape = 'u32[]', space=smem, size = 0x4, offset = 0x4, fixed_abs, tag = 'smem constant byte address 0x4 - core index']
  #allocation1 [shape = 'u32[144,128]{1,0:T(1,128)}', space=vmem, size = 0x12000, scoped, tag = 'internal scratch']
  #allocation2 [shape = 's32[1]{0}', space=sflag, size = 0x4, scoped, tag = 'scoped memory for tpu_custom_call.1']
  #allocation3 [shape = 's32[1]{0:T(128)S(6)}', space=smem, size = 0x200, scoped, tag = 'prefetched SMEM operand 0']
  %s0 = inlined_call_operand.<no memory space> [shape: s32[1], index: 0, kind: input, shape index: {}]
  %s1 = inlined_call_operand.hbm [shape: f32[2,256], index: 1, kind: input, shape index: {}]
  %s2 = inlined_call_operand.vmem [shape: f32[1,256], index: 2, kind: input, shape index: {}]
  %s3 = inlined_call_operand.hbm [shape: f32[2,256], index: 3, kind: output, shape index: {}]
  %s4 = sld [smem:[#allocation0]]
  $region22: #{tpu_custom_call.1} parent=0
    _
  %s6 = ssub.s32 1, %s4
  %s7 = scalar_select 0, %s6, %s4
  %8 = sst [smem:[#allocation3]] %s0
  $region1: #{tpu_custom_call.1} parent=0
    #allocation4 [shape = 'u8[2048]{0}', space=vmem, size = 0x800, scoped, tag = 'input window, operand 1, single buffered']
    #allocation5 [shape = 's32[1]{0}', space=sflag, size = 0x4, scoped, tag = 'scoped memory for tpu_custom_call.1']
    #allocation6 [shape = 's32[1]{0}', space=sflag, size = 0x4, scoped, tag = 'scoped memory for tpu_custom_call.1']
    #allocation7 [shape = 'u8[2048]{0}', space=vmem, size = 0x800, scoped, tag = 'output window, operand 0, single buffered']
    %9 = vsyncpa [#allocation5], 0
    %10 = vsyncpa [#allocation6], 0
    // Predicated region
    $region2: #{tpu_custom_call.1} parent=1 // pred_check
      _
    $region3: #{tpu_custom_call.1} parent=1 // pred_check_branch
      %12 = sbr.rel (0) target = $region5
    $region4: #{tpu_custom_call.1} parent=1 // pred_region
      %s14 = ssub.s32 64, 64
      %15 = vsyncadd [#allocation5], %s14
      %s17 = sshll.u32 [#allocation4], 4
      %s18 = int_to_ptr.vmem [resolvable:$true] %s17
      %20 = dma.hbm_to_vmem [thread:$0]  %s1, 64, %s18, [#allocation5]
    $region5: #{tpu_custom_call.1} parent=1 // pred_fallthru
      _
    // Predicated region
    $region6: #{tpu_custom_call.1} parent=1 // pred_check
      _
    $region7: #{tpu_custom_call.1} parent=1 // pred_check_branch
      %22 = sbr.rel (0) target = $region9
    $region8: #{tpu_custom_call.1} parent=1 // pred_region
      _
    $region9: #{tpu_custom_call.1} parent=1 // pred_fallthru
      _
    // Predicated region
    $region10: #{tpu_custom_call.1} parent=1 // pred_check
      _
    $region11: #{tpu_custom_call.1} parent=1 // pred_check_branch
      %24 = sbr.rel (0) target = $region13
    $region12: #{tpu_custom_call.1} parent=1 // pred_region
      %25 = dma.done [#allocation5], 64
    $region13: #{tpu_custom_call.1} parent=1 // pred_fallthru
      _
    %v26 = vld [vmem:[#allocation4] sm:$0xf]
    %v27 = vld [vmem:[%s2] sm:$0x3]
    %v29 = vlaneseq
    %v30 = vshrl.u32 %v29, 7
    %v31 = vsub.s32 0, %v30
    %v32 = vrot.slane %v27, %v31
    %v33 = vlaneseq
    %v34 = vshrl.u32 %v33, 7
    %v35 = vsub.s32 1, %v34
    %v36 = vrot.slane %v27, %v35
    %v37 = vcombine.low %v32, %v36
    %v39 = vunpack.c.l.s4 1983009808
    %v40 = vunpack.c.0.s8 %v39
    %v41 = vlaneseq
    %v42 = vshrl.u32 %v41, 7
    %v43 = vsub.s32 %v40, %v42
    %v44 = vrot.slane %v37, %v43
    %v46 = vadd.f32 %v26, %v44
    %47 = vst [vmem:[#allocation7] sm:$0xf] %v46
    // Predicated region
    $region14: #{tpu_custom_call.1} parent=1 // pred_check
      _
    $region15: #{tpu_custom_call.1} parent=1 // pred_check_branch
      %49 = sbr.rel (0) target = $region17
    $region16: #{tpu_custom_call.1} parent=1 // pred_region
      %s51 = ssub.s32 64, 64
      %52 = vsyncadd [#allocation6], %s51
      %s54 = sshll.u32 [#allocation7], 4
      %s55 = int_to_ptr.vmem [resolvable:$true] %s54
      %57 = dma.vmem_to_hbm [thread:$0]  %s55, 64, %s3, [#allocation6]
    $region17: #{tpu_custom_call.1} parent=1 // pred_fallthru
      _
    // Predicated region
    $region18: #{tpu_custom_call.1} parent=1 // pred_check
      _
    $region19: #{tpu_custom_call.1} parent=1 // pred_check_branch
      %59 = sbr.rel (0) target = $region21
    $region20: #{tpu_custom_call.1} parent=1 // pred_region
      %60 = dma.done [#allocation6], 64
    $region21: #{tpu_custom_call.1} parent=1 // pred_fallthru
      _
    %61 = vsyncpa [#allocation5], 1
    %62 = vsyncpa [#allocation6], 1

</llo_original>
